<compile_context>
chip_gen: v7x
topology: tpu7x:2x2x1
jax: 0.10.0
libtpu: 0.0.40
codegen_flags: <defaults>
</compile_context>

<pallas_src>
import functools

import jax
import jax.numpy as jnp
from jax import lax
from jax.experimental import pallas as pl
from jax.experimental.pallas import tpu as pltpu

LANES = 128
SUBLANES = 8
_SMALL_FALLBACK_ELEMS = 2048          # below this, plain XLA is strictly faster
_TARGET_TILE_ROWS_DEFAULT = 2048      # (2048, 128) f32 = 1 MiB / input / buffer
_TARGET_TILE_ROWS_V7X = 4096          # 2 MiB / input / buffer on v7x


def _neg_loss(x, m):
    """-[m*log(sigmoid(x/2)) + (1-m)*log(1-sigmoid(x/2))], numerically stable form."""
    x = x.astype(jnp.float32)
    m = m.astype(jnp.float32)
    z = x * 0.5
    return jnp.maximum(z, 0.0) + jnp.log1p(jnp.exp(-jnp.abs(z))) - m * z


def _device_tuning():
    """(num_parallel_slices, target_tile_rows) from the local TPU generation."""
    kind = ""
    try:
        kind = jax.devices()[0].device_kind.lower()
    except Exception:
        pass
    single_tc = any(s in kind for s in
                    ("v5e", "v5 lite", "v5lite", "v6e", "v6 lite", "v6lite"))
    multi_tc = (not single_tc) and any(s in kind for s in ("7x", "v7", "v5p", "v4"))
    num_slices = 2 if multi_tc else 1
    target_rows = _TARGET_TILE_ROWS_V7X if ("7x" in kind or "v7" in kind) \
        else _TARGET_TILE_ROWS_DEFAULT
    return num_slices, target_rows


def _modify_loss_kernel(pred_ref, mask_ref, out_ref, *, rows_total, tiles_per_slice):
    i = pl.program_id(0)              # parallel slice (TensorCore) id
    j = pl.program_id(1)              # sequential row-tile id within the slice
    tile_rows, lanes = pred_ref.shape
    assert tile_rows % SUBLANES == 0  # guaranteed by the wrapper

    @pl.when(j == 0)
    def _():
        out_ref[...] = jnp.zeros_like(out_ref)

    x = pred_ref[...].astype(jnp.float32)
    m = mask_ref[...].astype(jnp.float32)

    # Stable BCE-with-logits at temperature 2 (see _neg_loss); one exp + one log1p
    # per element — EUP stays off the critical path even at v7x HBM rates.
    z = x * 0.5
    neg_loss = jnp.maximum(z, 0.0) + jnp.log1p(jnp.exp(-jnp.abs(z))) - m * z

    def fold(v):
        # (tile_rows, 128) -> (8, 128): the reshape keeps (8,128) layout tiles
        # intact, so this is pure vreg-wise VALU adds (no XLU sublane reduce).
        return jnp.sum(v.reshape(tile_rows // SUBLANES, SUBLANES, lanes), axis=0)

    t = i * tiles_per_slice + j       # unclamped global tile id
    row0 = t * tile_rows              # first global row covered by this tile
    is_interior = row0 + tile_rows <= rows_total

    @pl.when(is_interior)             # full tile: mask-free fast path
    def _():
        out_ref[...] += fold(neg_loss)

    @pl.when(jnp.logical_not(is_interior))
    def _():
        # Ragged last tile or clamped duplicate tile of an over-provisioned slice.
        # Keep the select form: OOB rows hold garbage VMEM (possibly inf/nan).
        gr = row0 + lax.broadcasted_iota(jnp.int32, (tile_rows, lanes), 0)
        out_ref[...] += fold(jnp.where(gr < rows_total, neg_loss, 0.0))


def modify_loss(mask_pred, mask, *, target_tile_rows=None, num_slices=None):
    """Pallas TPU implementation of ModifyLoss.forward.  Returns a scalar f32."""
    assert mask_pred.shape == mask.shape
    n = int(mask_pred.size)
    assert n > 0

    auto_slices, auto_rows = _device_tuning()
    if target_tile_rows is None:
        target_tile_rows = auto_rows
    target_tile_rows = max(SUBLANES, (int(target_tile_rows) // SUBLANES) * SUBLANES)
    if num_slices is None:
        num_slices = auto_slices

    flat_pred = jnp.ravel(mask_pred)
    flat_mask = jnp.ravel(mask)

    # Tiny tensors: pallas_call would be 100% fixed cost — fused XLA wins.
    if n < _SMALL_FALLBACK_ELEMS:
        return jnp.sum(_neg_loss(flat_pred, flat_mask)) / jnp.float32(n)

    # Kernel consumes the largest (8k, 128)-shaped prefix; the < 1152-element
    # remainder is folded in below with a tiny XLA sum (no full-array jnp.pad).
    rows = (n // (LANES * SUBLANES)) * SUBLANES
    n_kernel = rows * LANES
    pred2d = flat_pred[:n_kernel].reshape(rows, LANES)
    mask2d = flat_mask[:n_kernel].reshape(rows, LANES)

    tail_sum = jnp.float32(0.0)
    if n_kernel < n:
        tail_sum = jnp.sum(_neg_loss(flat_pred[n_kernel:], flat_mask[n_kernel:]))

    # Row tiling: the whole slab when it fits (block == full array dim is always
    # legal), otherwise target_tile_rows; the last tile may be ragged (masked
    # in-kernel behind pl.when).
    tile_rows = rows if rows <= target_tile_rows else target_tile_rows
    row_tiles = pl.cdiv(rows, tile_rows)
    num_slices = max(1, min(int(num_slices), row_tiles))   # no pointless duplicates
    tiles_per_slice = pl.cdiv(row_tiles, num_slices)
    grid = (num_slices, tiles_per_slice)

    def in_index_map(i, j):
        # Clamp so an over-provisioned slice never requests an out-of-range block;
        # the duplicated read is fully masked inside the kernel.
        return (jnp.minimum(i * tiles_per_slice + j, row_tiles - 1), 0)

    kernel = functools.partial(_modify_loss_kernel,
                               rows_total=rows,
                               tiles_per_slice=tiles_per_slice)

    partials = pl.pallas_call(
        kernel,
        out_shape=jax.ShapeDtypeStruct((num_slices, SUBLANES, LANES), jnp.float32),
        grid_spec=pltpu.PrefetchScalarGridSpec(
            num_scalar_prefetch=0,
            grid=grid,
            in_specs=[
                pl.BlockSpec((tile_rows, LANES), in_index_map),
                pl.BlockSpec((tile_rows, LANES), in_index_map),
            ],
            # Per-slice (8, 128) accumulator; leading slice dim squeezed in-kernel.
            out_specs=pl.BlockSpec((None, SUBLANES, LANES), lambda i, j: (i, 0, 0)),
        ),
        compiler_params=pltpu.CompilerParams(
            dimension_semantics=("parallel", "arbitrary"),
        ),
    )(pred2d, mask2d)

    # Tiny final cross-sublane/lane reduce + mean scale, outside the kernel.
    return (jnp.sum(partials) + tail_sum) / jnp.float32(n)


def _reference(mask_pred, mask):
    """Exact PyTorch-form reference (including the 1e-10 epsilon)."""
    p = 1.0 / (1.0 + jnp.exp(-mask_pred.astype(jnp.float32) / 2.0))
    m = mask.astype(jnp.float32)
    loss = m * jnp.log(p + 1e-10) + (1.0 - m) * jnp.log(1.0 - p + 1e-10)
    return jnp.mean(-loss)


if __name__ == "__main__":
    key = jax.random.PRNGKey(0)

    # Primary shape: small segmentation-mask head output, NCHW = (2, 1, 16, 16).
    # Extra cases exercise every kernel path deterministically on any TPU:
    #   - small-input XLA fallback
    #   - aligned single-tile Pallas path (default tiling)
    #   - multi-tile path with ragged last tile, clamped duplicate tile and the
    #     2-slice parallel axis (forced via overrides)
    #   - unaligned size with the wrapper-side tail fold
    cases = [
        ((2, 1, 16, 16), {}),                                        # 512 elems
        ((2, 4, 64, 64), {}),                                        # 32768 elems
        ((2, 4, 64, 64), dict(target_tile_rows=40, num_slices=2)),   # forced multi-tile
        ((3, 2, 33, 35), {}),                                        # 6930 elems (tail)
    ]
    for shape, kw in cases:
        key, k1, k2 = jax.random.split(key, 3)
        mask_pred = jax.random.normal(k1, shape, dtype=jnp.float32) * 3.0
        mask = (jax.random.uniform(k2, shape) > 0.5).astype(jnp.float32)

        out = jax.block_until_ready(modify_loss(mask_pred, mask, **kw))
        ref = jax.block_until_ready(_reference(mask_pred, mask))
        assert jnp.allclose(out, ref, rtol=1e-4, atol=1e-5), \
            (shape, kw, float(out), float(ref))

    print("KERNEL_OK")
</pallas_src>

<mosaic_0001>
module attributes {stable_mosaic.version = 11 : i64} {
  func.func @_modify_loss_kernel(%arg0: i32, %arg1: i32, %arg2: memref<256x128xf32, #tpu.memory_space<vmem>>, %arg3: memref<256x128xf32, #tpu.memory_space<vmem>>, %arg4: memref<1x8x128xf32, #tpu.memory_space<vmem>>) attributes {dimension_semantics = [#tpu.dimension_semantics<parallel>, #tpu.dimension_semantics<arbitrary>], iteration_bounds = array<i64: 1, 1>, scalar_prefetch = 0 : i64, scratch_operands = 0 : i64, tpu.core_type = #tpu.core_type<tc>, window_params = [{transform_indices = @transform_0, window_bounds = array<i64: 256, 128>}, {transform_indices = @transform_1, window_bounds = array<i64: 256, 128>}, {transform_indices = @transform_2, window_bounds = array<i64: 1, 8, 128>}]} {
    %c0_i32 = arith.constant 0 : i32
    %0 = arith.cmpi eq, %arg1, %c0_i32 : i32
    %1 = arith.extui %0 : i1 to i32
    %c0_i32_0 = arith.constant 0 : i32
    %2 = arith.cmpi ne, %1, %c0_i32_0 : i32
    scf.if %2 {
      %cst_10 = arith.constant 0.000000e+00 : f32
      %27 = vector.broadcast %cst_10 : f32 to vector<8x128xf32>
      %c0_11 = arith.constant 0 : index
      %c0_12 = arith.constant 0 : index
      %c0_13 = arith.constant 0 : index
      %28 = vector.load %arg4[%c0_11, %c0_12, %c0_13] : memref<1x8x128xf32, #tpu.memory_space<vmem>>, vector<1x8x128xf32>
      %29 = vector.shape_cast %28 : vector<1x8x128xf32> to vector<8x128xf32>
      %30 = vector.shape_cast %27 : vector<8x128xf32> to vector<1x8x128xf32>
      tpu.vector_store %arg4[%c0_11, %c0_12, %c0_13], %30 {strides = array<i32>} : memref<1x8x128xf32, #tpu.memory_space<vmem>>, vector<1x8x128xf32>,
    } else {
    }
    %c0 = arith.constant 0 : index
    %c0_1 = arith.constant 0 : index
    %3 = vector.load %arg2[%c0, %c0_1] : memref<256x128xf32, #tpu.memory_space<vmem>>, vector<256x128xf32>
    %c0_2 = arith.constant 0 : index
    %c0_3 = arith.constant 0 : index
    %4 = vector.load %arg3[%c0_2, %c0_3] : memref<256x128xf32, #tpu.memory_space<vmem>>, vector<256x128xf32>
    %cst = arith.constant 5.000000e-01 : f32
    %5 = vector.broadcast %cst : f32 to vector<256x128xf32>
    %6 = arith.mulf %3, %5 : vector<256x128xf32>
    %cst_4 = arith.constant 0.000000e+00 : f32
    %7 = vector.broadcast %cst_4 : f32 to vector<256x128xf32>
    %8 = arith.maximumf %6, %7 : vector<256x128xf32>
    %9 = math.absf %6 : vector<256x128xf32>
    %cst_5 = arith.constant 0.000000e+00 : f32
    %10 = vector.broadcast %cst_5 : f32 to vector<256x128xf32>
    %11 = arith.subf %10, %9 : vector<256x128xf32>
    %12 = math.exp %11 : vector<256x128xf32>
    %13 = math.log1p %12 : vector<256x128xf32>
    %14 = arith.addf %8, %13 : vector<256x128xf32>
    %15 = arith.mulf %4, %6 : vector<256x128xf32>
    %16 = arith.subf %14, %15 : vector<256x128xf32>
    %c1_i32 = arith.constant 1 : i32
    %17 = arith.muli %arg0, %c1_i32 : i32
    %18 = arith.addi %17, %arg1 : i32
    %c256_i32 = arith.constant 256 : i32
    %19 = arith.muli %18, %c256_i32 : i32
    %c256_i32_6 = arith.constant 256 : i32
    %20 = arith.addi %19, %c256_i32_6 : i32
    %c256_i32_7 = arith.constant 256 : i32
    %21 = arith.cmpi sle, %20, %c256_i32_7 : i32
    %22 = arith.extui %21 : i1 to i32
    %c0_i32_8 = arith.constant 0 : i32
    %23 = arith.cmpi ne, %22, %c0_i32_8 : i32
    scf.if %23 {
      %c0_10 = arith.constant 0 : index
      %c0_11 = arith.constant 0 : index
      %c0_12 = arith.constant 0 : index
      %27 = vector.load %arg4[%c0_10, %c0_11, %c0_12] : memref<1x8x128xf32, #tpu.memory_space<vmem>>, vector<1x8x128xf32>
      %28 = vector.shape_cast %27 : vector<1x8x128xf32> to vector<8x128xf32>
      %29 = vector.shape_cast %16 : vector<256x128xf32> to vector<32x8x128xf32>
      %cst_13 = arith.constant dense<0.000000e+00> : vector<8x128xf32>
      %30 = vector.multi_reduction <add>, %29, %cst_13 [0] : vector<32x8x128xf32> to vector<8x128xf32>
      %31 = arith.addf %28, %30 : vector<8x128xf32>
      %c0_14 = arith.constant 0 : index
      %c0_15 = arith.constant 0 : index
      %c0_16 = arith.constant 0 : index
      %32 = vector.load %arg4[%c0_14, %c0_15, %c0_16] : memref<1x8x128xf32, #tpu.memory_space<vmem>>, vector<1x8x128xf32>
      %33 = vector.shape_cast %32 : vector<1x8x128xf32> to vector<8x128xf32>
      %34 = vector.shape_cast %31 : vector<8x128xf32> to vector<1x8x128xf32>
      tpu.vector_store %arg4[%c0_14, %c0_15, %c0_16], %34 {strides = array<i32>} : memref<1x8x128xf32, #tpu.memory_space<vmem>>, vector<1x8x128xf32>,
    } else {
    }
    %true = arith.constant true
    %24 = arith.xori %21, %true : i1
    %25 = arith.extui %24 : i1 to i32
    %c0_i32_9 = arith.constant 0 : i32
    %26 = arith.cmpi ne, %25, %c0_i32_9 : i32
    scf.if %26 {
      %27 = tpu.iota {dimensions = array<i32: 0>} : vector<256x128xi32>
      %28 = vector.broadcast %19 : i32 to vector<256x128xi32>
      %29 = arith.addi %28, %27 : vector<256x128xi32>
      %c0_10 = arith.constant 0 : index
      %c0_11 = arith.constant 0 : index
      %c0_12 = arith.constant 0 : index
      %30 = vector.load %arg4[%c0_10, %c0_11, %c0_12] : memref<1x8x128xf32, #tpu.memory_space<vmem>>, vector<1x8x128xf32>
      %31 = vector.shape_cast %30 : vector<1x8x128xf32> to vector<8x128xf32>
      %c256_i32_13 = arith.constant 256 : i32
      %32 = vector.broadcast %c256_i32_13 : i32 to vector<256x128xi32>
      %33 = arith.cmpi slt, %29, %32 : vector<256x128xi32>
      %cst_14 = arith.constant 0.000000e+00 : f32
      %34 = vector.broadcast %cst_14 : f32 to vector<256x128xf32>
      %35 = arith.select %33, %16, %34 : vector<256x128xi1>, vector<256x128xf32>
      %36 = vector.shape_cast %35 : vector<256x128xf32> to vector<32x8x128xf32>
      %cst_15 = arith.constant dense<0.000000e+00> : vector<8x128xf32>
      %37 = vector.multi_reduction <add>, %36, %cst_15 [0] : vector<32x8x128xf32> to vector<8x128xf32>
      %38 = arith.addf %31, %37 : vector<8x128xf32>
      %c0_16 = arith.constant 0 : index
      %c0_17 = arith.constant 0 : index
      %c0_18 = arith.constant 0 : index
      %39 = vector.load %arg4[%c0_16, %c0_17, %c0_18] : memref<1x8x128xf32, #tpu.memory_space<vmem>>, vector<1x8x128xf32>
      %40 = vector.shape_cast %39 : vector<1x8x128xf32> to vector<8x128xf32>
      %41 = vector.shape_cast %38 : vector<8x128xf32> to vector<1x8x128xf32>
      tpu.vector_store %arg4[%c0_16, %c0_17, %c0_18], %41 {strides = array<i32>} : memref<1x8x128xf32, #tpu.memory_space<vmem>>, vector<1x8x128xf32>,
    } else {
    }
    return
  }
  func.func @transform_0(%arg0: i32, %arg1: i32) -> (i32, i32) {
    %c1_i32 = arith.constant 1 : i32
    %0 = arith.muli %arg0, %c1_i32 : i32
    %1 = arith.addi %0, %arg1 : i32
    %c0_i32 = arith.constant 0 : i32
    %2 = arith.minsi %1, %c0_i32 : i32
    %c0_i32_0 = arith.constant 0 : i32
    %c0_i32_1 = arith.constant 0 : i32
    return %2, %c0_i32_0 : i32, i32
  }
  func.func @transform_1(%arg0: i32, %arg1: i32) -> (i32, i32) {
    %c1_i32 = arith.constant 1 : i32
    %0 = arith.muli %arg0, %c1_i32 : i32
    %1 = arith.addi %0, %arg1 : i32
    %c0_i32 = arith.constant 0 : i32
    %2 = arith.minsi %1, %c0_i32 : i32
    %c0_i32_0 = arith.constant 0 : i32
    %c0_i32_1 = arith.constant 0 : i32
    return %2, %c0_i32_0 : i32, i32
  }
  func.func @transform_2(%arg0: i32, %arg1: i32) -> (i32, i32, i32) {
    %c0_i32 = arith.constant 0 : i32
    %c0_i32_0 = arith.constant 0 : i32
    %c0_i32_1 = arith.constant 0 : i32
    return %arg0, %c0_i32, %c0_i32_0 : i32, i32, i32
  }
}

</mosaic_0001>

<llo_original>
// kernel: tpu_custom_call.1
$region0: #{tpu_custom_call.1}
  #allocation0 [shape = 'u32[]', space=smem, size = 0x4, offset = 0x4, fixed_abs, tag = 'smem constant byte address 0x4 - core index']
  #allocation1 [shape = 'u32[144,128]{1,0:T(1,128)}', space=vmem, size = 0x12000, scoped, tag = 'internal scratch']
  %s0 = inlined_call_operand.hbm [shape: f32[256,128], index: 0, kind: input, shape index: {}]
  %s1 = inlined_call_operand.hbm [shape: f32[256,128], index: 1, kind: input, shape index: {}]
  %s2 = inlined_call_operand.hbm [shape: f32[1,8,128], index: 2, kind: output, shape index: {}]
  %s3 = sld [smem:[#allocation0]]
  $region38: #{tpu_custom_call.1} parent=0
    _
  %s5 = ssub.s32 1, %s3
  %s6 = scalar_select 0, %s5, %s3
  $region1: #{tpu_custom_call.1} parent=0
    #allocation2 [shape = 'u8[131072]{0}', space=vmem, size = 0x20000, scoped, tag = 'input window, operand 0, single buffered']
    #allocation3 [shape = 's32[1]{0}', space=sflag, size = 0x4, scoped, tag = 'scoped memory for tpu_custom_call.1']
    #allocation4 [shape = 's32[1]{0}', space=sflag, size = 0x4, scoped, tag = 'scoped memory for tpu_custom_call.1']
    #allocation5 [shape = 'u8[131072]{0}', space=vmem, size = 0x20000, scoped, tag = 'input window, operand 1, single buffered']
    #allocation6 [shape = 's32[1]{0}', space=sflag, size = 0x4, scoped, tag = 'scoped memory for tpu_custom_call.1']
    #allocation7 [shape = 'u8[4096]{0}', space=vmem, size = 0x1000, scoped, tag = 'output window, operand 0, single buffered']
    %7 = vsyncpa [#allocation3], 0
    %8 = vsyncpa [#allocation6], 0
    %9 = vsyncpa [#allocation4], 0
    // Predicated region
    $region2: #{tpu_custom_call.1} parent=1 // pred_check
      _
    $region3: #{tpu_custom_call.1} parent=1 // pred_check_branch
      %11 = sbr.rel (0) target = $region5
    $region4: #{tpu_custom_call.1} parent=1 // pred_region
      %s12 = sadd.s32 0, 0
      %p13 = scmp.lt.s32.totalorder %s12, 0
      %s14 = scalar_select %p13, %s12, 0
      %s15 = smul.u32 32, %s14
      %s17 = ssub.s32 4096, 4096
      %18 = vsyncadd [#allocation3], %s17
      %s19 = smul.addr %s15, 128
      %s20 = scalar_lea.hbm %s0, %s19
      %s21 = sshll.u32 [#allocation2], 4
      %s22 = int_to_ptr.vmem [resolvable:$true] %s21
      %27 = dma.hbm_to_vmem [thread:$0]  %s20, 4096, %s22, [#allocation3], 128, 128, 8
    $region5: #{tpu_custom_call.1} parent=1 // pred_fallthru
      _
    // Predicated region
    $region6: #{tpu_custom_call.1} parent=1 // pred_check
      _
    $region7: #{tpu_custom_call.1} parent=1 // pred_check_branch
      %29 = sbr.rel (0) target = $region9
    $region8: #{tpu_custom_call.1} parent=1 // pred_region
      %s30 = sadd.s32 0, 0
      %p31 = scmp.lt.s32.totalorder %s30, 0
      %s32 = scalar_select %p31, %s30, 0
      %s33 = smul.u32 32, %s32
      %s35 = ssub.s32 4096, 4096
      %36 = vsyncadd [#allocation6], %s35
      %s37 = smul.addr %s33, 128
      %s38 = scalar_lea.hbm %s1, %s37
      %s39 = sshll.u32 [#allocation5], 4
      %s40 = int_to_ptr.vmem [resolvable:$true] %s39
      %45 = dma.hbm_to_vmem [thread:$0]  %s38, 4096, %s40, [#allocation6], 128, 128, 8
    $region9: #{tpu_custom_call.1} parent=1 // pred_fallthru
      _
    // Predicated region
    $region10: #{tpu_custom_call.1} parent=1 // pred_check
      _
    $region11: #{tpu_custom_call.1} parent=1 // pred_check_branch
      %47 = sbr.rel (0) target = $region13
    $region12: #{tpu_custom_call.1} parent=1 // pred_region
      %48 = dma.done [#allocation3], 4096
    $region13: #{tpu_custom_call.1} parent=1 // pred_fallthru
      _
    // Predicated region
    $region14: #{tpu_custom_call.1} parent=1 // pred_check
      _
    $region15: #{tpu_custom_call.1} parent=1 // pred_check_branch
      %50 = sbr.rel (0) target = $region17
    $region16: #{tpu_custom_call.1} parent=1 // pred_region
      %51 = dma.done [#allocation6], 4096
    $region17: #{tpu_custom_call.1} parent=1 // pred_fallthru
      _
    %s52 = sadd.s32 0, 0
    %p53 = scmp.lt.s32.totalorder %s52, 0
    %s54 = scalar_select %p53, %s52, 0
    %s55 = smul.u32 32, %s54
    %s56 = sadd.s32 0, 0
    %p57 = scmp.lt.s32.totalorder %s56, 0
    %s58 = scalar_select %p57, %s56, 0
    %s59 = smul.u32 32, %s58
    %p60 = scmp.eq.s32.totalorder 0, 0
    // Predicated region
    $region18: #{tpu_custom_call.1} parent=1 // pred_check
      %p61 = pneg %p60
    $region19: #{tpu_custom_call.1} parent=1 // pred_check_branch
      %63 = sbr.rel (%p61) target = $region21
    $region20: #{tpu_custom_call.1} parent=1 // pred_region
      %64 = vst [vmem:[#allocation7] sm:$0xff] 0.0
    $region21: #{tpu_custom_call.1} parent=1 // pred_fallthru
      _
    %v65 = vld [vmem:[#allocation2] sm:$0xff]
    %v66 = vld [vmem:[#allocation2 + $0x8] sm:$0xff]
    %v67 = vld [vmem:[#allocation2 + $0x10] sm:$0xff]
    %v68 = vld [vmem:[#allocation2 + $0x18] sm:$0xff]
    %v69 = vld [vmem:[#allocation2 + $0x20] sm:$0xff]
    %v70 = vld [vmem:[#allocation2 + $0x28] sm:$0xff]
    %v71 = vld [vmem:[#allocation2 + $0x30] sm:$0xff]
    %v72 = vld [vmem:[#allocation2 + $0x38] sm:$0xff]
    %v73 = vld [vmem:[#allocation2 + $0x40] sm:$0xff]
    %v74 = vld [vmem:[#allocation2 + $0x48] sm:$0xff]
    %v75 = vld [vmem:[#allocation2 + $0x50] sm:$0xff]
    %v76 = vld [vmem:[#allocation2 + $0x58] sm:$0xff]
    %v77 = vld [vmem:[#allocation2 + $0x60] sm:$0xff]
    %v78 = vld [vmem:[#allocation2 + $0x68] sm:$0xff]
    %v79 = vld [vmem:[#allocation2 + $0x70] sm:$0xff]
    %v80 = vld [vmem:[#allocation2 + $0x78] sm:$0xff]
    %v81 = vld [vmem:[#allocation2 + $0x80] sm:$0xff]
    %v82 = vld [vmem:[#allocation2 + $0x88] sm:$0xff]
    %v83 = vld [vmem:[#allocation2 + $0x90] sm:$0xff]
    %v84 = vld [vmem:[#allocation2 + $0x98] sm:$0xff]
    %v85 = vld [vmem:[#allocation2 + $0xa0] sm:$0xff]
    %v86 = vld [vmem:[#allocation2 + $0xa8] sm:$0xff]
    %v87 = vld [vmem:[#allocation2 + $0xb0] sm:$0xff]
    %v88 = vld [vmem:[#allocation2 + $0xb8] sm:$0xff]
    %v89 = vld [vmem:[#allocation2 + $0xc0] sm:$0xff]
    %v90 = vld [vmem:[#allocation2 + $0xc8] sm:$0xff]
    %v91 = vld [vmem:[#allocation2 + $0xd0] sm:$0xff]
    %v92 = vld [vmem:[#allocation2 + $0xd8] sm:$0xff]
    %v93 = vld [vmem:[#allocation2 + $0xe0] sm:$0xff]
    %v94 = vld [vmem:[#allocation2 + $0xe8] sm:$0xff]
    %v95 = vld [vmem:[#allocation2 + $0xf0] sm:$0xff]
    %v96 = vld [vmem:[#allocation2 + $0xf8] sm:$0xff]
    %v97 = vld [vmem:[#allocation5] sm:$0xff]
    %v98 = vld [vmem:[#allocation5 + $0x8] sm:$0xff]
    %v99 = vld [vmem:[#allocation5 + $0x10] sm:$0xff]
    %v100 = vld [vmem:[#allocation5 + $0x18] sm:$0xff]
    %v101 = vld [vmem:[#allocation5 + $0x20] sm:$0xff]
    %v102 = vld [vmem:[#allocation5 + $0x28] sm:$0xff]
    %v103 = vld [vmem:[#allocation5 + $0x30] sm:$0xff]
    %v104 = vld [vmem:[#allocation5 + $0x38] sm:$0xff]
    %v105 = vld [vmem:[#allocation5 + $0x40] sm:$0xff]
    %v106 = vld [vmem:[#allocation5 + $0x48] sm:$0xff]
    %v107 = vld [vmem:[#allocation5 + $0x50] sm:$0xff]
    %v108 = vld [vmem:[#allocation5 + $0x58] sm:$0xff]
    %v109 = vld [vmem:[#allocation5 + $0x60] sm:$0xff]
    %v110 = vld [vmem:[#allocation5 + $0x68] sm:$0xff]
    %v111 = vld [vmem:[#allocation5 + $0x70] sm:$0xff]
    %v112 = vld [vmem:[#allocation5 + $0x78] sm:$0xff]
    %v113 = vld [vmem:[#allocation5 + $0x80] sm:$0xff]
    %v114 = vld [vmem:[#allocation5 + $0x88] sm:$0xff]
    %v115 = vld [vmem:[#allocation5 + $0x90] sm:$0xff]
    %v116 = vld [vmem:[#allocation5 + $0x98] sm:$0xff]
    %v117 = vld [vmem:[#allocation5 + $0xa0] sm:$0xff]
    %v118 = vld [vmem:[#allocation5 + $0xa8] sm:$0xff]
    %v119 = vld [vmem:[#allocation5 + $0xb0] sm:$0xff]
    %v120 = vld [vmem:[#allocation5 + $0xb8] sm:$0xff]
    %v121 = vld [vmem:[#allocation5 + $0xc0] sm:$0xff]
    %v122 = vld [vmem:[#allocation5 + $0xc8] sm:$0xff]
    %v123 = vld [vmem:[#allocation5 + $0xd0] sm:$0xff]
    %v124 = vld [vmem:[#allocation5 + $0xd8] sm:$0xff]
    %v125 = vld [vmem:[#allocation5 + $0xe0] sm:$0xff]
    %v126 = vld [vmem:[#allocation5 + $0xe8] sm:$0xff]
    %v127 = vld [vmem:[#allocation5 + $0xf0] sm:$0xff]
    %v128 = vld [vmem:[#allocation5 + $0xf8] sm:$0xff]
    %v129 = vmul.f32 %v65, 0.5
    %v130 = vmul.f32 %v66, 0.5
    %v131 = vmul.f32 %v67, 0.5
    %v132 = vmul.f32 %v68, 0.5
    %v133 = vmul.f32 %v69, 0.5
    %v134 = vmul.f32 %v70, 0.5
    %v135 = vmul.f32 %v71, 0.5
    %v136 = vmul.f32 %v72, 0.5
    %v137 = vmul.f32 %v73, 0.5
    %v138 = vmul.f32 %v74, 0.5
    %v139 = vmul.f32 %v75, 0.5
    %v140 = vmul.f32 %v76, 0.5
    %v141 = vmul.f32 %v77, 0.5
    %v142 = vmul.f32 %v78, 0.5
    %v143 = vmul.f32 %v79, 0.5
    %v144 = vmul.f32 %v80, 0.5
    %v145 = vmul.f32 %v81, 0.5
    %v146 = vmul.f32 %v82, 0.5
    %v147 = vmul.f32 %v83, 0.5
    %v148 = vmul.f32 %v84, 0.5
    %v149 = vmul.f32 %v85, 0.5
    %v150 = vmul.f32 %v86, 0.5
    %v151 = vmul.f32 %v87, 0.5
    %v152 = vmul.f32 %v88, 0.5
    %v153 = vmul.f32 %v89, 0.5
    %v154 = vmul.f32 %v90, 0.5
    %v155 = vmul.f32 %v91, 0.5
    %v156 = vmul.f32 %v92, 0.5
    %v157 = vmul.f32 %v93, 0.5
    %v158 = vmul.f32 %v94, 0.5
    %v159 = vmul.f32 %v95, 0.5
    %v160 = vmul.f32 %v96, 0.5
    %v161 = vmax.f32 %v129, 0.0
    %v162 = vmax.f32 %v130, 0.0
    %v163 = vmax.f32 %v131, 0.0
    %v164 = vmax.f32 %v132, 0.0
    %v165 = vmax.f32 %v133, 0.0
    %v166 = vmax.f32 %v134, 0.0
    %v167 = vmax.f32 %v135, 0.0
    %v168 = vmax.f32 %v136, 0.0
    %v169 = vmax.f32 %v137, 0.0
    %v170 = vmax.f32 %v138, 0.0
    %v171 = vmax.f32 %v139, 0.0
    %v172 = vmax.f32 %v140, 0.0
    %v173 = vmax.f32 %v141, 0.0
    %v174 = vmax.f32 %v142, 0.0
    %v175 = vmax.f32 %v143, 0.0
    %v176 = vmax.f32 %v144, 0.0
    %v177 = vmax.f32 %v145, 0.0
    %v178 = vmax.f32 %v146, 0.0
    %v179 = vmax.f32 %v147, 0.0
    %v180 = vmax.f32 %v148, 0.0
    %v181 = vmax.f32 %v149, 0.0
    %v182 = vmax.f32 %v150, 0.0
    %v183 = vmax.f32 %v151, 0.0
    %v184 = vmax.f32 %v152, 0.0
    %v185 = vmax.f32 %v153, 0.0
    %v186 = vmax.f32 %v154, 0.0
    %v187 = vmax.f32 %v155, 0.0
    %v188 = vmax.f32 %v156, 0.0
    %v189 = vmax.f32 %v157, 0.0
    %v190 = vmax.f32 %v158, 0.0
    %v191 = vmax.f32 %v159, 0.0
    %v192 = vmax.f32 %v160, 0.0
    %v193 = vand.u32 2147483647, %v129
    %v194 = vand.u32 2147483647, %v130
    %v195 = vand.u32 2147483647, %v131
    %v196 = vand.u32 2147483647, %v132
    %v197 = vand.u32 2147483647, %v133
    %v198 = vand.u32 2147483647, %v134
    %v199 = vand.u32 2147483647, %v135
    %v200 = vand.u32 2147483647, %v136
    %v201 = vand.u32 2147483647, %v137
    %v202 = vand.u32 2147483647, %v138
    %v203 = vand.u32 2147483647, %v139
    %v204 = vand.u32 2147483647, %v140
    %v205 = vand.u32 2147483647, %v141
    %v206 = vand.u32 2147483647, %v142
    %v207 = vand.u32 2147483647, %v143
    %v208 = vand.u32 2147483647, %v144
    %v209 = vand.u32 2147483647, %v145
    %v210 = vand.u32 2147483647, %v146
    %v211 = vand.u32 2147483647, %v147
    %v212 = vand.u32 2147483647, %v148
    %v213 = vand.u32 2147483647, %v149
    %v214 = vand.u32 2147483647, %v150
    %v215 = vand.u32 2147483647, %v151
    %v216 = vand.u32 2147483647, %v152
    %v217 = vand.u32 2147483647, %v153
    %v218 = vand.u32 2147483647, %v154
    %v219 = vand.u32 2147483647, %v155
    %v220 = vand.u32 2147483647, %v156
    %v221 = vand.u32 2147483647, %v157
    %v222 = vand.u32 2147483647, %v158
    %v223 = vand.u32 2147483647, %v159
    %v224 = vand.u32 2147483647, %v160
    %v225 = vsub.f32 0.0, %v193
    %v226 = vsub.f32 0.0, %v194
    %v227 = vsub.f32 0.0, %v195
    %v228 = vsub.f32 0.0, %v196
    %v229 = vsub.f32 0.0, %v197
    %v230 = vsub.f32 0.0, %v198
    %v231 = vsub.f32 0.0, %v199
    %v232 = vsub.f32 0.0, %v200
    %v233 = vsub.f32 0.0, %v201
    %v234 = vsub.f32 0.0, %v202
    %v235 = vsub.f32 0.0, %v203
    %v236 = vsub.f32 0.0, %v204
    %v237 = vsub.f32 0.0, %v205
    %v238 = vsub.f32 0.0, %v206
    %v239 = vsub.f32 0.0, %v207
    %v240 = vsub.f32 0.0, %v208
    %v241 = vsub.f32 0.0, %v209
    %v242 = vsub.f32 0.0, %v210
    %v243 = vsub.f32 0.0, %v211
    %v244 = vsub.f32 0.0, %v212
    %v245 = vsub.f32 0.0, %v213
    %v246 = vsub.f32 0.0, %v214
    %v247 = vsub.f32 0.0, %v215
    %v248 = vsub.f32 0.0, %v216
    %v249 = vsub.f32 0.0, %v217
    %v250 = vsub.f32 0.0, %v218
    %v251 = vsub.f32 0.0, %v219
    %v252 = vsub.f32 0.0, %v220
    %v253 = vsub.f32 0.0, %v221
    %v254 = vsub.f32 0.0, %v222
    %v255 = vsub.f32 0.0, %v223
    %v256 = vsub.f32 0.0, %v224
    %v257 = vmul.f32 %v225, 1.442695
    %v258 = vpow.pop %v257
    %v259 = vmul.f32 %v226, 1.442695
    %v260 = vpow.pop %v259
    %v261 = vmul.f32 %v227, 1.442695
    %v262 = vpow.pop %v261
    %v263 = vmul.f32 %v228, 1.442695
    %v264 = vpow.pop %v263
    %v265 = vmul.f32 %v229, 1.442695
    %v266 = vpow.pop %v265
    %v267 = vmul.f32 %v230, 1.442695
    %v268 = vpow.pop %v267
    %v269 = vmul.f32 %v231, 1.442695
    %v270 = vpow.pop %v269
    %v271 = vmul.f32 %v232, 1.442695
    %v272 = vpow.pop %v271
    %v273 = vmul.f32 %v233, 1.442695
    %v274 = vpow.pop %v273
    %v275 = vmul.f32 %v234, 1.442695
    %v276 = vpow.pop %v275
    %v277 = vmul.f32 %v235, 1.442695
    %v278 = vpow.pop %v277
    %v279 = vmul.f32 %v236, 1.442695
    %v280 = vpow.pop %v279
    %v281 = vmul.f32 %v237, 1.442695
    %v282 = vpow.pop %v281
    %v283 = vmul.f32 %v238, 1.442695
    %v284 = vpow.pop %v283
    %v285 = vmul.f32 %v239, 1.442695
    %v286 = vpow.pop %v285
    %v287 = vmul.f32 %v240, 1.442695
    %v288 = vpow.pop %v287
    %v289 = vmul.f32 %v241, 1.442695
    %v290 = vpow.pop %v289
    %v291 = vmul.f32 %v242, 1.442695
    %v292 = vpow.pop %v291
    %v293 = vmul.f32 %v243, 1.442695
    %v294 = vpow.pop %v293
    %v295 = vmul.f32 %v244, 1.442695
    %v296 = vpow.pop %v295
    %v297 = vmul.f32 %v245, 1.442695
    %v298 = vpow.pop %v297
    %v299 = vmul.f32 %v246, 1.442695
    %v300 = vpow.pop %v299
    %v301 = vmul.f32 %v247, 1.442695
    %v302 = vpow.pop %v301
    %v303 = vmul.f32 %v248, 1.442695
    %v304 = vpow.pop %v303
    %v305 = vmul.f32 %v249, 1.442695
    %v306 = vpow.pop %v305
    %v307 = vmul.f32 %v250, 1.442695
    %v308 = vpow.pop %v307
    %v309 = vmul.f32 %v251, 1.442695
    %v310 = vpow.pop %v309
    %v311 = vmul.f32 %v252, 1.442695
    %v312 = vpow.pop %v311
    %v313 = vmul.f32 %v253, 1.442695
    %v314 = vpow.pop %v313
    %v315 = vmul.f32 %v254, 1.442695
    %v316 = vpow.pop %v315
    %v317 = vmul.f32 %v255, 1.442695
    %v318 = vpow.pop %v317
    %v319 = vmul.f32 %v256, 1.442695
    %v320 = vpow.pop %v319
    %v321 = vadd.f32 %v258, 1.0
    %v322 = vlog2.pop %v321
    %v323 = vmul.f32 %v322, 0.6931472
    %v324 = vmul.f32 -0.5, %v258
    %v325 = vadd.f32 %v324, 1.0
    %v326 = vmul.f32 %v325, %v258
    %v327 = vand.u32 2147483647, %v258
    %vm328 = vcmp.lt.f32.partialorder %v327, 0.0004427343
    %v329 = vsel %vm328, %v326, %v323
    %v330 = vadd.f32 %v260, 1.0
    %v331 = vlog2.pop %v330
    %v332 = vmul.f32 %v331, 0.6931472
    %v333 = vmul.f32 -0.5, %v260
    %v334 = vadd.f32 %v333, 1.0
    %v335 = vmul.f32 %v334, %v260
    %v336 = vand.u32 2147483647, %v260
    %vm337 = vcmp.lt.f32.partialorder %v336, 0.0004427343
    %v338 = vsel %vm337, %v335, %v332
    %v339 = vadd.f32 %v262, 1.0
    %v340 = vlog2.pop %v339
    %v341 = vmul.f32 %v340, 0.6931472
    %v342 = vmul.f32 -0.5, %v262
    %v343 = vadd.f32 %v342, 1.0
    %v344 = vmul.f32 %v343, %v262
    %v345 = vand.u32 2147483647, %v262
    %vm346 = vcmp.lt.f32.partialorder %v345, 0.0004427343
    %v347 = vsel %vm346, %v344, %v341
    %v348 = vadd.f32 %v264, 1.0
    %v349 = vlog2.pop %v348
    %v350 = vmul.f32 %v349, 0.6931472
    %v351 = vmul.f32 -0.5, %v264
    %v352 = vadd.f32 %v351, 1.0
    %v353 = vmul.f32 %v352, %v264
    %v354 = vand.u32 2147483647, %v264
    %vm355 = vcmp.lt.f32.partialorder %v354, 0.0004427343
    %v356 = vsel %vm355, %v353, %v350
    %v357 = vadd.f32 %v266, 1.0
    %v358 = vlog2.pop %v357
    %v359 = vmul.f32 %v358, 0.6931472
    %v360 = vmul.f32 -0.5, %v266
    %v361 = vadd.f32 %v360, 1.0
    %v362 = vmul.f32 %v361, %v266
    %v363 = vand.u32 2147483647, %v266
    %vm364 = vcmp.lt.f32.partialorder %v363, 0.0004427343
    %v365 = vsel %vm364, %v362, %v359
    %v366 = vadd.f32 %v268, 1.0
    %v367 = vlog2.pop %v366
    %v368 = vmul.f32 %v367, 0.6931472
    %v369 = vmul.f32 -0.5, %v268
    %v370 = vadd.f32 %v369, 1.0
    %v371 = vmul.f32 %v370, %v268
    %v372 = vand.u32 2147483647, %v268
    %vm373 = vcmp.lt.f32.partialorder %v372, 0.0004427343
    %v374 = vsel %vm373, %v371, %v368
    %v375 = vadd.f32 %v270, 1.0
    %v376 = vlog2.pop %v375
    %v377 = vmul.f32 %v376, 0.6931472
    %v378 = vmul.f32 -0.5, %v270
    %v379 = vadd.f32 %v378, 1.0
    %v380 = vmul.f32 %v379, %v270
    %v381 = vand.u32 2147483647, %v270
    %vm382 = vcmp.lt.f32.partialorder %v381, 0.0004427343
    %v383 = vsel %vm382, %v380, %v377
    %v384 = vadd.f32 %v272, 1.0
    %v385 = vlog2.pop %v384
    %v386 = vmul.f32 %v385, 0.6931472
    %v387 = vmul.f32 -0.5, %v272
    %v388 = vadd.f32 %v387, 1.0
    %v389 = vmul.f32 %v388, %v272
    %v390 = vand.u32 2147483647, %v272
    %vm391 = vcmp.lt.f32.partialorder %v390, 0.0004427343
    %v392 = vsel %vm391, %v389, %v386
    %v393 = vadd.f32 %v274, 1.0
    %v394 = vlog2.pop %v393
    %v395 = vmul.f32 %v394, 0.6931472
    %v396 = vmul.f32 -0.5, %v274
    %v397 = vadd.f32 %v396, 1.0
    %v398 = vmul.f32 %v397, %v274
    %v399 = vand.u32 2147483647, %v274
    %vm400 = vcmp.lt.f32.partialorder %v399, 0.0004427343
    %v401 = vsel %vm400, %v398, %v395
    %v402 = vadd.f32 %v276, 1.0
    %v403 = vlog2.pop %v402
    %v404 = vmul.f32 %v403, 0.6931472
    %v405 = vmul.f32 -0.5, %v276
    %v406 = vadd.f32 %v405, 1.0
    %v407 = vmul.f32 %v406, %v276
    %v408 = vand.u32 2147483647, %v276
    %vm409 = vcmp.lt.f32.partialorder %v408, 0.0004427343
    %v410 = vsel %vm409, %v407, %v404
    %v411 = vadd.f32 %v278, 1.0
    %v412 = vlog2.pop %v411
    %v413 = vmul.f32 %v412, 0.6931472
    %v414 = vmul.f32 -0.5, %v278
    %v415 = vadd.f32 %v414, 1.0
    %v416 = vmul.f32 %v415, %v278
    %v417 = vand.u32 2147483647, %v278
    %vm418 = vcmp.lt.f32.partialorder %v417, 0.0004427343
    %v419 = vsel %vm418, %v416, %v413
    %v420 = vadd.f32 %v280, 1.0
    %v421 = vlog2.pop %v420
    %v422 = vmul.f32 %v421, 0.6931472
    %v423 = vmul.f32 -0.5, %v280
    %v424 = vadd.f32 %v423, 1.0
    %v425 = vmul.f32 %v424, %v280
    %v426 = vand.u32 2147483647, %v280
    %vm427 = vcmp.lt.f32.partialorder %v426, 0.0004427343
    %v428 = vsel %vm427, %v425, %v422
    %v429 = vadd.f32 %v282, 1.0
    %v430 = vlog2.pop %v429
    %v431 = vmul.f32 %v430, 0.6931472
    %v432 = vmul.f32 -0.5, %v282
    %v433 = vadd.f32 %v432, 1.0
    %v434 = vmul.f32 %v433, %v282
    %v435 = vand.u32 2147483647, %v282
    %vm436 = vcmp.lt.f32.partialorder %v435, 0.0004427343
    %v437 = vsel %vm436, %v434, %v431
    %v438 = vadd.f32 %v284, 1.0
    %v439 = vlog2.pop %v438
    %v440 = vmul.f32 %v439, 0.6931472
    %v441 = vmul.f32 -0.5, %v284
    %v442 = vadd.f32 %v441, 1.0
    %v443 = vmul.f32 %v442, %v284
    %v444 = vand.u32 2147483647, %v284
    %vm445 = vcmp.lt.f32.partialorder %v444, 0.0004427343
    %v446 = vsel %vm445, %v443, %v440
    %v447 = vadd.f32 %v286, 1.0
    %v448 = vlog2.pop %v447
    %v449 = vmul.f32 %v448, 0.6931472
    %v450 = vmul.f32 -0.5, %v286
    %v451 = vadd.f32 %v450, 1.0
    %v452 = vmul.f32 %v451, %v286
    %v453 = vand.u32 2147483647, %v286
    %vm454 = vcmp.lt.f32.partialorder %v453, 0.0004427343
    %v455 = vsel %vm454, %v452, %v449
    %v456 = vadd.f32 %v288, 1.0
    %v457 = vlog2.pop %v456
    %v458 = vmul.f32 %v457, 0.6931472
    %v459 = vmul.f32 -0.5, %v288
    %v460 = vadd.f32 %v459, 1.0
    %v461 = vmul.f32 %v460, %v288
    %v462 = vand.u32 2147483647, %v288
    %vm463 = vcmp.lt.f32.partialorder %v462, 0.0004427343
    %v464 = vsel %vm463, %v461, %v458
    %v465 = vadd.f32 %v290, 1.0
    %v466 = vlog2.pop %v465
    %v467 = vmul.f32 %v466, 0.6931472
    %v468 = vmul.f32 -0.5, %v290
    %v469 = vadd.f32 %v468, 1.0
    %v470 = vmul.f32 %v469, %v290
    %v471 = vand.u32 2147483647, %v290
    %vm472 = vcmp.lt.f32.partialorder %v471, 0.0004427343
    %v473 = vsel %vm472, %v470, %v467
    %v474 = vadd.f32 %v292, 1.0
    %v475 = vlog2.pop %v474
    %v476 = vmul.f32 %v475, 0.6931472
    %v477 = vmul.f32 -0.5, %v292
    %v478 = vadd.f32 %v477, 1.0
    %v479 = vmul.f32 %v478, %v292
    %v480 = vand.u32 2147483647, %v292
    %vm481 = vcmp.lt.f32.partialorder %v480, 0.0004427343
    %v482 = vsel %vm481, %v479, %v476
    %v483 = vadd.f32 %v294, 1.0
    %v484 = vlog2.pop %v483
    %v485 = vmul.f32 %v484, 0.6931472
    %v486 = vmul.f32 -0.5, %v294
    %v487 = vadd.f32 %v486, 1.0
    %v488 = vmul.f32 %v487, %v294
    %v489 = vand.u32 2147483647, %v294
    %vm490 = vcmp.lt.f32.partialorder %v489, 0.0004427343
    %v491 = vsel %vm490, %v488, %v485
    %v492 = vadd.f32 %v296, 1.0
    %v493 = vlog2.pop %v492
    %v494 = vmul.f32 %v493, 0.6931472
    %v495 = vmul.f32 -0.5, %v296
    %v496 = vadd.f32 %v495, 1.0
    %v497 = vmul.f32 %v496, %v296
    %v498 = vand.u32 2147483647, %v296
    %vm499 = vcmp.lt.f32.partialorder %v498, 0.0004427343
    %v500 = vsel %vm499, %v497, %v494
    %v501 = vadd.f32 %v298, 1.0
    %v502 = vlog2.pop %v501
    %v503 = vmul.f32 %v502, 0.6931472
    %v504 = vmul.f32 -0.5, %v298
    %v505 = vadd.f32 %v504, 1.0
    %v506 = vmul.f32 %v505, %v298
    %v507 = vand.u32 2147483647, %v298
    %vm508 = vcmp.lt.f32.partialorder %v507, 0.0004427343
    %v509 = vsel %vm508, %v506, %v503
    %v510 = vadd.f32 %v300, 1.0
    %v511 = vlog2.pop %v510
    %v512 = vmul.f32 %v511, 0.6931472
    %v513 = vmul.f32 -0.5, %v300
    %v514 = vadd.f32 %v513, 1.0
    %v515 = vmul.f32 %v514, %v300
    %v516 = vand.u32 2147483647, %v300
    %vm517 = vcmp.lt.f32.partialorder %v516, 0.0004427343
    %v518 = vsel %vm517, %v515, %v512
    %v519 = vadd.f32 %v302, 1.0
    %v520 = vlog2.pop %v519
    %v521 = vmul.f32 %v520, 0.6931472
    %v522 = vmul.f32 -0.5, %v302
    %v523 = vadd.f32 %v522, 1.0
    %v524 = vmul.f32 %v523, %v302
    %v525 = vand.u32 2147483647, %v302
    %vm526 = vcmp.lt.f32.partialorder %v525, 0.0004427343
    %v527 = vsel %vm526, %v524, %v521
    %v528 = vadd.f32 %v304, 1.0
    %v529 = vlog2.pop %v528
    %v530 = vmul.f32 %v529, 0.6931472
    %v531 = vmul.f32 -0.5, %v304
    %v532 = vadd.f32 %v531, 1.0
    %v533 = vmul.f32 %v532, %v304
    %v534 = vand.u32 2147483647, %v304
    %vm535 = vcmp.lt.f32.partialorder %v534, 0.0004427343
    %v536 = vsel %vm535, %v533, %v530
    %v537 = vadd.f32 %v306, 1.0
    %v538 = vlog2.pop %v537
    %v539 = vmul.f32 %v538, 0.6931472
    %v540 = vmul.f32 -0.5, %v306
    %v541 = vadd.f32 %v540, 1.0
    %v542 = vmul.f32 %v541, %v306
    %v543 = vand.u32 2147483647, %v306
    %vm544 = vcmp.lt.f32.partialorder %v543, 0.0004427343
    %v545 = vsel %vm544, %v542, %v539
    %v546 = vadd.f32 %v308, 1.0
    %v547 = vlog2.pop %v546
    %v548 = vmul.f32 %v547, 0.6931472
    %v549 = vmul.f32 -0.5, %v308
    %v550 = vadd.f32 %v549, 1.0
    %v551 = vmul.f32 %v550, %v308
    %v552 = vand.u32 2147483647, %v308
    %vm553 = vcmp.lt.f32.partialorder %v552, 0.0004427343
    %v554 = vsel %vm553, %v551, %v548
    %v555 = vadd.f32 %v310, 1.0
    %v556 = vlog2.pop %v555
    %v557 = vmul.f32 %v556, 0.6931472
    %v558 = vmul.f32 -0.5, %v310
    %v559 = vadd.f32 %v558, 1.0
    %v560 = vmul.f32 %v559, %v310
    %v561 = vand.u32 2147483647, %v310
    %vm562 = vcmp.lt.f32.partialorder %v561, 0.0004427343
    %v563 = vsel %vm562, %v560, %v557
    %v564 = vadd.f32 %v312, 1.0
    %v565 = vlog2.pop %v564
    %v566 = vmul.f32 %v565, 0.6931472
    %v567 = vmul.f32 -0.5, %v312
    %v568 = vadd.f32 %v567, 1.0
    %v569 = vmul.f32 %v568, %v312
    %v570 = vand.u32 2147483647, %v312
    %vm571 = vcmp.lt.f32.partialorder %v570, 0.0004427343
    %v572 = vsel %vm571, %v569, %v566
    %v573 = vadd.f32 %v314, 1.0
    %v574 = vlog2.pop %v573
    %v575 = vmul.f32 %v574, 0.6931472
    %v576 = vmul.f32 -0.5, %v314
    %v577 = vadd.f32 %v576, 1.0
    %v578 = vmul.f32 %v577, %v314
    %v579 = vand.u32 2147483647, %v314
    %vm580 = vcmp.lt.f32.partialorder %v579, 0.0004427343
    %v581 = vsel %vm580, %v578, %v575
    %v582 = vadd.f32 %v316, 1.0
    %v583 = vlog2.pop %v582
    %v584 = vmul.f32 %v583, 0.6931472
    %v585 = vmul.f32 -0.5, %v316
    %v586 = vadd.f32 %v585, 1.0
    %v587 = vmul.f32 %v586, %v316
    %v588 = vand.u32 2147483647, %v316
    %vm589 = vcmp.lt.f32.partialorder %v588, 0.0004427343
    %v590 = vsel %vm589, %v587, %v584
    %v591 = vadd.f32 %v318, 1.0
    %v592 = vlog2.pop %v591
    %v593 = vmul.f32 %v592, 0.6931472
    %v594 = vmul.f32 -0.5, %v318
    %v595 = vadd.f32 %v594, 1.0
    %v596 = vmul.f32 %v595, %v318
    %v597 = vand.u32 2147483647, %v318
    %vm598 = vcmp.lt.f32.partialorder %v597, 0.0004427343
    %v599 = vsel %vm598, %v596, %v593
    %v600 = vadd.f32 %v320, 1.0
    %v601 = vlog2.pop %v600
    %v602 = vmul.f32 %v601, 0.6931472
    %v603 = vmul.f32 -0.5, %v320
    %v604 = vadd.f32 %v603, 1.0
    %v605 = vmul.f32 %v604, %v320
    %v606 = vand.u32 2147483647, %v320
    %vm607 = vcmp.lt.f32.partialorder %v606, 0.0004427343
    %v608 = vsel %vm607, %v605, %v602
    %v609 = vadd.f32 %v161, %v329
    %v610 = vadd.f32 %v162, %v338
    %v611 = vadd.f32 %v163, %v347
    %v612 = vadd.f32 %v164, %v356
    %v613 = vadd.f32 %v165, %v365
    %v614 = vadd.f32 %v166, %v374
    %v615 = vadd.f32 %v167, %v383
    %v616 = vadd.f32 %v168, %v392
    %v617 = vadd.f32 %v169, %v401
    %v618 = vadd.f32 %v170, %v410
    %v619 = vadd.f32 %v171, %v419
    %v620 = vadd.f32 %v172, %v428
    %v621 = vadd.f32 %v173, %v437
    %v622 = vadd.f32 %v174, %v446
    %v623 = vadd.f32 %v175, %v455
    %v624 = vadd.f32 %v176, %v464
    %v625 = vadd.f32 %v177, %v473
    %v626 = vadd.f32 %v178, %v482
    %v627 = vadd.f32 %v179, %v491
    %v628 = vadd.f32 %v180, %v500
    %v629 = vadd.f32 %v181, %v509
    %v630 = vadd.f32 %v182, %v518
    %v631 = vadd.f32 %v183, %v527
    %v632 = vadd.f32 %v184, %v536
    %v633 = vadd.f32 %v185, %v545
    %v634 = vadd.f32 %v186, %v554
    %v635 = vadd.f32 %v187, %v563
    %v636 = vadd.f32 %v188, %v572
    %v637 = vadd.f32 %v189, %v581
    %v638 = vadd.f32 %v190, %v590
    %v639 = vadd.f32 %v191, %v599
    %v640 = vadd.f32 %v192, %v608
    %v641 = vmul.f32 %v97, %v129
    %v642 = vmul.f32 %v98, %v130
    %v643 = vmul.f32 %v99, %v131
    %v644 = vmul.f32 %v100, %v132
    %v645 = vmul.f32 %v101, %v133
    %v646 = vmul.f32 %v102, %v134
    %v647 = vmul.f32 %v103, %v135
    %v648 = vmul.f32 %v104, %v136
    %v649 = vmul.f32 %v105, %v137
    %v650 = vmul.f32 %v106, %v138
    %v651 = vmul.f32 %v107, %v139
    %v652 = vmul.f32 %v108, %v140
    %v653 = vmul.f32 %v109, %v141
    %v654 = vmul.f32 %v110, %v142
    %v655 = vmul.f32 %v111, %v143
    %v656 = vmul.f32 %v112, %v144
    %v657 = vmul.f32 %v113, %v145
    %v658 = vmul.f32 %v114, %v146
    %v659 = vmul.f32 %v115, %v147
    %v660 = vmul.f32 %v116, %v148
    %v661 = vmul.f32 %v117, %v149
    %v662 = vmul.f32 %v118, %v150
    %v663 = vmul.f32 %v119, %v151
    %v664 = vmul.f32 %v120, %v152
    %v665 = vmul.f32 %v121, %v153
    %v666 = vmul.f32 %v122, %v154
    %v667 = vmul.f32 %v123, %v155
    %v668 = vmul.f32 %v124, %v156
    %v669 = vmul.f32 %v125, %v157
    %v670 = vmul.f32 %v126, %v158
    %v671 = vmul.f32 %v127, %v159
    %v672 = vmul.f32 %v128, %v160
    %v673 = vsub.f32 %v609, %v641
    %v674 = vsub.f32 %v610, %v642
    %v675 = vsub.f32 %v611, %v643
    %v676 = vsub.f32 %v612, %v644
    %v677 = vsub.f32 %v613, %v645
    %v678 = vsub.f32 %v614, %v646
    %v679 = vsub.f32 %v615, %v647
    %v680 = vsub.f32 %v616, %v648
    %v681 = vsub.f32 %v617, %v649
    %v682 = vsub.f32 %v618, %v650
    %v683 = vsub.f32 %v619, %v651
    %v684 = vsub.f32 %v620, %v652
    %v685 = vsub.f32 %v621, %v653
    %v686 = vsub.f32 %v622, %v654
    %v687 = vsub.f32 %v623, %v655
    %v688 = vsub.f32 %v624, %v656
    %v689 = vsub.f32 %v625, %v657
    %v690 = vsub.f32 %v626, %v658
    %v691 = vsub.f32 %v627, %v659
    %v692 = vsub.f32 %v628, %v660
    %v693 = vsub.f32 %v629, %v661
    %v694 = vsub.f32 %v630, %v662
    %v695 = vsub.f32 %v631, %v663
    %v696 = vsub.f32 %v632, %v664
    %v697 = vsub.f32 %v633, %v665
    %v698 = vsub.f32 %v634, %v666
    %v699 = vsub.f32 %v635, %v667
    %v700 = vsub.f32 %v636, %v668
    %v701 = vsub.f32 %v637, %v669
    %v702 = vsub.f32 %v638, %v670
    %v703 = vsub.f32 %v639, %v671
    %v704 = vsub.f32 %v640, %v672
    %s705 = sadd.s32 0, 0
    %s706 = smul.u32 %s705, 256
    %s707 = sadd.s32 %s706, 256
    %p708 = scmp.le.s32.totalorder %s707, 256
    // Predicated region
    $region22: #{tpu_custom_call.1} parent=1 // pred_check
      %p709 = pneg %p708
    $region23: #{tpu_custom_call.1} parent=1 // pred_check_branch
      %711 = sbr.rel (%p709) target = $region25
    $region24: #{tpu_custom_call.1} parent=1 // pred_region
      %v712 = vld [vmem:[#allocation7] sm:$0xff]
      %v713 = vadd.f32 %v673, %v674
      %v714 = vadd.f32 %v713, %v675
      %v715 = vadd.f32 %v714, %v676
      %v716 = vadd.f32 %v715, %v677
      %v717 = vadd.f32 %v716, %v678
      %v718 = vadd.f32 %v717, %v679
      %v719 = vadd.f32 %v718, %v680
      %v720 = vadd.f32 %v719, %v681
      %v721 = vadd.f32 %v720, %v682
      %v722 = vadd.f32 %v721, %v683
      %v723 = vadd.f32 %v722, %v684
      %v724 = vadd.f32 %v723, %v685
      %v725 = vadd.f32 %v724, %v686
      %v726 = vadd.f32 %v725, %v687
      %v727 = vadd.f32 %v726, %v688
      %v728 = vadd.f32 %v727, %v689
      %v729 = vadd.f32 %v728, %v690
      %v730 = vadd.f32 %v729, %v691
      %v731 = vadd.f32 %v730, %v692
      %v732 = vadd.f32 %v731, %v693
      %v733 = vadd.f32 %v732, %v694
      %v734 = vadd.f32 %v733, %v695
      %v735 = vadd.f32 %v734, %v696
      %v736 = vadd.f32 %v735, %v697
      %v737 = vadd.f32 %v736, %v698
      %v738 = vadd.f32 %v737, %v699
      %v739 = vadd.f32 %v738, %v700
      %v740 = vadd.f32 %v739, %v701
      %v741 = vadd.f32 %v740, %v702
      %v742 = vadd.f32 %v741, %v703
      %v743 = vadd.f32 %v742, %v704
      %v744 = vadd.f32 %v712, %v743
      %745 = vst [vmem:[#allocation7] sm:$0xff] %v744
    $region25: #{tpu_custom_call.1} parent=1 // pred_fallthru
      _
    %p746 = scmp.gt.s32.totalorder %s707, 256
    // Predicated region
    $region26: #{tpu_custom_call.1} parent=1 // pred_check
      %p747 = pneg %p746
    $region27: #{tpu_custom_call.1} parent=1 // pred_check_branch
      %749 = sbr.rel (%p747) target = $region29
    $region28: #{tpu_custom_call.1} parent=1 // pred_region
      %v750 = vlaneseq
      %v751 = vshrl.u32 %v750, 7
      %v752 = vadd.s32 %v751, 8
      %v753 = vadd.s32 %v751, 16
      %v754 = vadd.s32 %v751, 24
      %v755 = vadd.s32 %v751, 32
      %v756 = vadd.s32 %v751, 40
      %v757 = vadd.s32 %v751, 48
      %v758 = vadd.s32 %v751, 56
      %v759 = vadd.s32 %v751, 64
      %v760 = vadd.s32 %v751, 72
      %v761 = vadd.s32 %v751, 80
      %v762 = vadd.s32 %v751, 88
      %v763 = vadd.s32 %v751, 96
      %v764 = vadd.s32 %v751, 104
      %v765 = vadd.s32 %v751, 112
      %v766 = vadd.s32 %v751, 120
      %v767 = vadd.s32 %v751, 128
      %v768 = vadd.s32 %v751, 136
      %v769 = vadd.s32 %v751, 144
      %v770 = vadd.s32 %v751, 152
      %v771 = vadd.s32 %v751, 160
      %v772 = vadd.s32 %v751, 168
      %v773 = vadd.s32 %v751, 176
      %v774 = vadd.s32 %v751, 184
      %v775 = vadd.s32 %v751, 192
      %v776 = vadd.s32 %v751, 200
      %v777 = vadd.s32 %v751, 208
      %v778 = vadd.s32 %v751, 216
      %v779 = vadd.s32 %v751, 224
      %v780 = vadd.s32 %v751, 232
      %v781 = vadd.s32 %v751, 240
      %v782 = vadd.s32 %v751, 248
      %v783 = vstv %s706
      %v784 = vadd.s32 %v783, %v751
      %v785 = vadd.s32 %v783, %v752
      %v786 = vadd.s32 %v783, %v753
      %v787 = vadd.s32 %v783, %v754
      %v788 = vadd.s32 %v783, %v755
      %v789 = vadd.s32 %v783, %v756
      %v790 = vadd.s32 %v783, %v757
      %v791 = vadd.s32 %v783, %v758
      %v792 = vadd.s32 %v783, %v759
      %v793 = vadd.s32 %v783, %v760
      %v794 = vadd.s32 %v783, %v761
      %v795 = vadd.s32 %v783, %v762
      %v796 = vadd.s32 %v783, %v763
      %v797 = vadd.s32 %v783, %v764
      %v798 = vadd.s32 %v783, %v765
      %v799 = vadd.s32 %v783, %v766
      %v800 = vadd.s32 %v783, %v767
      %v801 = vadd.s32 %v783, %v768
      %v802 = vadd.s32 %v783, %v769
      %v803 = vadd.s32 %v783, %v770
      %v804 = vadd.s32 %v783, %v771
      %v805 = vadd.s32 %v783, %v772
      %v806 = vadd.s32 %v783, %v773
      %v807 = vadd.s32 %v783, %v774
      %v808 = vadd.s32 %v783, %v775
      %v809 = vadd.s32 %v783, %v776
      %v810 = vadd.s32 %v783, %v777
      %v811 = vadd.s32 %v783, %v778
      %v812 = vadd.s32 %v783, %v779
      %v813 = vadd.s32 %v783, %v780
      %v814 = vadd.s32 %v783, %v781
      %v815 = vadd.s32 %v783, %v782
      %v816 = vld [vmem:[#allocation7] sm:$0xff]
      %vm817 = vcmp.lt.s32.totalorder %v784, 256
      %vm818 = vcmp.lt.s32.totalorder %v785, 256
      %vm819 = vcmp.lt.s32.totalorder %v786, 256
      %vm820 = vcmp.lt.s32.totalorder %v787, 256
      %vm821 = vcmp.lt.s32.totalorder %v788, 256
      %vm822 = vcmp.lt.s32.totalorder %v789, 256
      %vm823 = vcmp.lt.s32.totalorder %v790, 256
      %vm824 = vcmp.lt.s32.totalorder %v791, 256
      %vm825 = vcmp.lt.s32.totalorder %v792, 256
      %vm826 = vcmp.lt.s32.totalorder %v793, 256
      %vm827 = vcmp.lt.s32.totalorder %v794, 256
      %vm828 = vcmp.lt.s32.totalorder %v795, 256
      %vm829 = vcmp.lt.s32.totalorder %v796, 256
      %vm830 = vcmp.lt.s32.totalorder %v797, 256
      %vm831 = vcmp.lt.s32.totalorder %v798, 256
      %vm832 = vcmp.lt.s32.totalorder %v799, 256
      %vm833 = vcmp.lt.s32.totalorder %v800, 256
      %vm834 = vcmp.lt.s32.totalorder %v801, 256
      %vm835 = vcmp.lt.s32.totalorder %v802, 256
      %vm836 = vcmp.lt.s32.totalorder %v803, 256
      %vm837 = vcmp.lt.s32.totalorder %v804, 256
      %vm838 = vcmp.lt.s32.totalorder %v805, 256
      %vm839 = vcmp.lt.s32.totalorder %v806, 256
      %vm840 = vcmp.lt.s32.totalorder %v807, 256
      %vm841 = vcmp.lt.s32.totalorder %v808, 256
      %vm842 = vcmp.lt.s32.totalorder %v809, 256
      %vm843 = vcmp.lt.s32.totalorder %v810, 256
      %vm844 = vcmp.lt.s32.totalorder %v811, 256
      %vm845 = vcmp.lt.s32.totalorder %v812, 256
      %vm846 = vcmp.lt.s32.totalorder %v813, 256
      %vm847 = vcmp.lt.s32.totalorder %v814, 256
      %vm848 = vcmp.lt.s32.totalorder %v815, 256
      %v849 = vsel %vm817, %v673, 0.0
      %v850 = vsel %vm818, %v674, 0.0
      %v851 = vsel %vm819, %v675, 0.0
      %v852 = vsel %vm820, %v676, 0.0
      %v853 = vsel %vm821, %v677, 0.0
      %v854 = vsel %vm822, %v678, 0.0
      %v855 = vsel %vm823, %v679, 0.0
      %v856 = vsel %vm824, %v680, 0.0
      %v857 = vsel %vm825, %v681, 0.0
      %v858 = vsel %vm826, %v682, 0.0
      %v859 = vsel %vm827, %v683, 0.0
      %v860 = vsel %vm828, %v684, 0.0
      %v861 = vsel %vm829, %v685, 0.0
      %v862 = vsel %vm830, %v686, 0.0
      %v863 = vsel %vm831, %v687, 0.0
      %v864 = vsel %vm832, %v688, 0.0
      %v865 = vsel %vm833, %v689, 0.0
      %v866 = vsel %vm834, %v690, 0.0
      %v867 = vsel %vm835, %v691, 0.0
      %v868 = vsel %vm836, %v692, 0.0
      %v869 = vsel %vm837, %v693, 0.0
      %v870 = vsel %vm838, %v694, 0.0
      %v871 = vsel %vm839, %v695, 0.0
      %v872 = vsel %vm840, %v696, 0.0
      %v873 = vsel %vm841, %v697, 0.0
      %v874 = vsel %vm842, %v698, 0.0
      %v875 = vsel %vm843, %v699, 0.0
      %v876 = vsel %vm844, %v700, 0.0
      %v877 = vsel %vm845, %v701, 0.0
      %v878 = vsel %vm846, %v702, 0.0
      %v879 = vsel %vm847, %v703, 0.0
      %v880 = vsel %vm848, %v704, 0.0
      %v881 = vadd.f32 %v849, %v850
      %v882 = vadd.f32 %v881, %v851
      %v883 = vadd.f32 %v882, %v852
      %v884 = vadd.f32 %v883, %v853
      %v885 = vadd.f32 %v884, %v854
      %v886 = vadd.f32 %v885, %v855
      %v887 = vadd.f32 %v886, %v856
      %v888 = vadd.f32 %v887, %v857
      %v889 = vadd.f32 %v888, %v858
      %v890 = vadd.f32 %v889, %v859
      %v891 = vadd.f32 %v890, %v860
      %v892 = vadd.f32 %v891, %v861
      %v893 = vadd.f32 %v892, %v862
      %v894 = vadd.f32 %v893, %v863
      %v895 = vadd.f32 %v894, %v864
      %v896 = vadd.f32 %v895, %v865
      %v897 = vadd.f32 %v896, %v866
      %v898 = vadd.f32 %v897, %v867
      %v899 = vadd.f32 %v898, %v868
      %v900 = vadd.f32 %v899, %v869
      %v901 = vadd.f32 %v900, %v870
      %v902 = vadd.f32 %v901, %v871
      %v903 = vadd.f32 %v902, %v872
      %v904 = vadd.f32 %v903, %v873
      %v905 = vadd.f32 %v904, %v874
      %v906 = vadd.f32 %v905, %v875
      %v907 = vadd.f32 %v906, %v876
      %v908 = vadd.f32 %v907, %v877
      %v909 = vadd.f32 %v908, %v878
      %v910 = vadd.f32 %v909, %v879
      %v911 = vadd.f32 %v910, %v880
      %v912 = vadd.f32 %v816, %v911
      %913 = vst [vmem:[#allocation7] sm:$0xff] %v912
    $region29: #{tpu_custom_call.1} parent=1 // pred_fallthru
      _
    // Predicated region
    $region30: #{tpu_custom_call.1} parent=1 // pred_check
      _
    $region31: #{tpu_custom_call.1} parent=1 // pred_check_branch
      %915 = sbr.rel (0) target = $region33
    $region32: #{tpu_custom_call.1} parent=1 // pred_region
      %s917 = ssub.s32 128, 128
      %918 = vsyncadd [#allocation4], %s917
      %s920 = sshll.u32 [#allocation7], 4
      %s921 = int_to_ptr.vmem [resolvable:$true] %s920
      %923 = dma.vmem_to_hbm [thread:$0]  %s921, 128, %s2, [#allocation4]
    $region33: #{tpu_custom_call.1} parent=1 // pred_fallthru
      _
    // Predicated region
    $region34: #{tpu_custom_call.1} parent=1 // pred_check
      _
    $region35: #{tpu_custom_call.1} parent=1 // pred_check_branch
      %925 = sbr.rel (0) target = $region37
    $region36: #{tpu_custom_call.1} parent=1 // pred_region
      %926 = dma.done [#allocation4], 128
    $region37: #{tpu_custom_call.1} parent=1 // pred_fallthru
      _
    %927 = vsyncpa [#allocation3], 1
    %928 = vsyncpa [#allocation6], 1
    %929 = vsyncpa [#allocation4], 1

</llo_original>
